<compile_context>
chip_gen: v5e
topology: v5e:2x2
jax: 0.10.0
libtpu: 0.0.40
codegen_flags: <defaults>
</compile_context>

<pallas_src>
import functools
import math

import jax
import jax.numpy as jnp
from jax.experimental import pallas as pl
from jax.experimental.pallas import tpu as pltpu


_TILE_B = 256  # rows per grid step; multiple of 8, comfortably fits v7x VMEM.


def _round_up(x: int, m: int) -> int:
    return ((x + m - 1) // m) * m


def _timestep_embedding_kernel(freqs_ref, t_ref, o_ref, *, half: int,
                               dim_pad: int, aligned: bool):
    """One (TILE_B, dim_pad) output tile of the sinusoidal embedding.

    freqs_ref: (1, half_pad) f32 -- precomputed freqs (zero-padded lanes).
    t_ref:     (TILE_B, 1)   f32 -- timesteps for this tile.
    o_ref:     (TILE_B, dim_pad) -- lane-dense output tile (dim_pad % 128 == 0).
    """
    t = t_ref[...]                       # (TILE_B, 1)
    freqs = freqs_ref[...]               # (1, half_pad)
    args = t * freqs                     # (TILE_B, half_pad), f32 broadcast
    cos_v = jnp.cos(args)
    sin_v = jnp.sin(args)
    tb = t.shape[0]
    tail = dim_pad - 2 * half

    if aligned:
        # half % 128 == 0 (half_pad == half): two lane-aligned direct slice
        # stores, no concatenate, no extra VMEM pass over the output slab.
        o_ref[:, 0:half] = cos_v.astype(o_ref.dtype)
        o_ref[:, half:2 * half] = sin_v.astype(o_ref.dtype)
        if tail > 0:  # odd dim -> zero-pad region (aligned, unmasked store)
            o_ref[:, 2 * half:dim_pad] = jnp.zeros((tb, tail), o_ref.dtype)
    else:
        # Irregular half: single contiguous lane-dense full-block store; one
        # concatenate builds the tile once (the old second pad-concat is gone).
        pieces = [cos_v[:, :half], sin_v[:, :half]]
        if tail > 0:
            pieces.append(jnp.zeros((tb, tail), jnp.float32))
        o_ref[...] = jnp.concatenate(pieces, axis=-1).astype(o_ref.dtype)


def diffusion_timestep_embedding(t: jax.Array, dim: int,
                                 max_period: float = 10000.0,
                                 out_dtype=jnp.float32) -> jax.Array:
    """JAX wrapper matching DiffusionTimestepEmbedding.forward.

    Args:
      t:   [B] array of timesteps (any real/int dtype).
      dim: embedding dimension (> 0).
      out_dtype: output dtype (float32 matches the reference; bf16 halves the
        HBM writeback if the consumer is bf16 -- math stays in f32 either way).
    Returns:
      [B, dim] `out_dtype` embedding.
    """
    if t.ndim != 1:
        raise ValueError(f"Input tensor t must be 1D (batch_size,), got shape {t.shape}")
    if dim <= 0:
        raise ValueError(f"dim ({dim}) must be positive.")

    B = t.shape[0]
    half = dim // 2
    if half == 0:
        # dim == 1: the reference returns all zeros.
        return jnp.zeros((B, 1), dtype=out_dtype)

    aligned = (half % 128 == 0)
    half_pad = half if aligned else _round_up(half, 128)
    dim_pad = _round_up(dim, 128)

    # Batch padding / tiling: sublane rows in multiples of 8, tiled over B.
    b_pad = _round_up(B, 8)
    if b_pad <= _TILE_B:
        tile_b = b_pad
    else:
        tile_b = _TILE_B
        b_pad = _round_up(b_pad, tile_b)
    num_tiles = b_pad // tile_b

    # freqs computed once here (hoisted out of the sequential grid loop),
    # zero-padded to a lane-dense (1, half_pad) block.
    freqs = jnp.exp(
        -math.log(float(max_period)) * jnp.arange(half, dtype=jnp.float32) / half
    )
    if half_pad > half:
        freqs = jnp.concatenate(
            [freqs, jnp.zeros((half_pad - half,), jnp.float32)])
    freqs = freqs.reshape(1, half_pad)

    t2 = t.astype(jnp.float32).reshape(B, 1)
    if b_pad > B:
        t2 = jnp.pad(t2, ((0, b_pad - B), (0, 0)))

    kernel = functools.partial(
        _timestep_embedding_kernel, half=half, dim_pad=dim_pad, aligned=aligned)

    out_bytes = jnp.dtype(out_dtype).itemsize
    cost = pl.CostEstimate(
        flops=2 * b_pad * half_pad,
        transcendentals=2 * b_pad * half_pad,
        bytes_accessed=4 * (b_pad + half_pad) + out_bytes * b_pad * dim_pad,
    )

    out_pad = pl.pallas_call(
        kernel,
        out_shape=jax.ShapeDtypeStruct((b_pad, dim_pad), out_dtype),
        grid=(num_tiles,),
        in_specs=[
            pl.BlockSpec((1, half_pad), lambda i: (0, 0)),   # freqs (resident)
            pl.BlockSpec((tile_b, 1), lambda i: (i, 0)),     # timesteps tile
        ],
        out_specs=pl.BlockSpec((tile_b, dim_pad), lambda i: (i, 0)),
        compiler_params=pltpu.CompilerParams(
            dimension_semantics=("parallel",)),
        cost_estimate=cost,
    )(freqs, t2)

    if b_pad > B or dim_pad > dim:
        out_pad = out_pad[:B, :dim]
    return out_pad


def _reference(t: jax.Array, dim: int, max_period: float = 10000.0) -> jax.Array:
    """Pure-JAX reference mirroring the PyTorch forward exactly."""
    half = dim // 2
    if half == 0:
        return jnp.zeros((t.shape[0], 1), dtype=jnp.float32)
    freqs = jnp.exp(
        -math.log(max_period) * jnp.arange(half, dtype=jnp.float32) / half
    )
    args = t.astype(jnp.float32)[:, None] * freqs[None, :]
    emb = jnp.concatenate([jnp.cos(args), jnp.sin(args)], axis=-1)
    if dim % 2 != 0:
        emb = jnp.concatenate([emb, jnp.zeros_like(emb[:, :1])], axis=-1)
    return emb


if __name__ == "__main__":
    key = jax.random.PRNGKey(0)
    # (batch, dim): unaligned half / aligned even / aligned odd + ragged batch /
    # multi-tile grid path.
    cases = [(8, 32), (8, 256), (5, 257), (300, 256)]
    for i, (batch, dim) in enumerate(cases):
        k = jax.random.fold_in(key, i)
        t = jax.random.uniform(k, (batch,), minval=0.0, maxval=1000.0,
                               dtype=jnp.float32)
        out = jax.block_until_ready(diffusion_timestep_embedding(t, dim))
        ref = _reference(t, dim)
        assert out.shape == (batch, dim), (out.shape, batch, dim)
        assert out.dtype == jnp.float32, out.dtype
        assert jnp.allclose(out, ref, atol=2e-5, rtol=2e-5), \
            f"mismatch vs reference for batch={batch}, dim={dim}"
    print("KERNEL_OK")
</pallas_src>

<mosaic_0001>
module attributes {stable_mosaic.version = 11 : i64} {
  func.func @_timestep_embedding_kernel(%arg0: i32, %arg1: memref<1x128xf32, #tpu.memory_space<vmem>>, %arg2: memref<8x1xf32, #tpu.memory_space<vmem>>, %arg3: memref<8x128xf32, #tpu.memory_space<vmem>>) attributes {dimension_semantics = [#tpu.dimension_semantics<parallel>], iteration_bounds = array<i64: 1>, scalar_prefetch = 0 : i64, scratch_operands = 0 : i64, tpu.core_type = #tpu.core_type<tc>, window_params = [{pipeline_mode = #tpu.pipeline_mode<synchronous>, transform_indices = @transform_0, window_bounds = array<i64: 1, 128>}, {transform_indices = @transform_1, window_bounds = array<i64: 8, 1>}, {transform_indices = @transform_2, window_bounds = array<i64: 8, 128>}]} {
    %c0 = arith.constant 0 : index
    %c0_0 = arith.constant 0 : index
    %0 = vector.load %arg2[%c0, %c0_0] : memref<8x1xf32, #tpu.memory_space<vmem>>, vector<8x1xf32>
    %c0_1 = arith.constant 0 : index
    %c0_2 = arith.constant 0 : index
    %1 = vector.load %arg1[%c0_1, %c0_2] : memref<1x128xf32, #tpu.memory_space<vmem>>, vector<1x128xf32>
    %2 = vector.broadcast %0 : vector<8x1xf32> to vector<8x128xf32>
    %3 = vector.broadcast %1 : vector<1x128xf32> to vector<8x128xf32>
    %4 = arith.mulf %2, %3 : vector<8x128xf32>
    %5 = math.cos %4 : vector<8x128xf32>
    %6 = math.sin %4 : vector<8x128xf32>
    %7 = vector.extract_strided_slice %5 {offsets = [0, 0], sizes = [8, 16], strides = [1, 1]} : vector<8x128xf32> to vector<8x16xf32>
    %8 = vector.extract_strided_slice %6 {offsets = [0, 0], sizes = [8, 16], strides = [1, 1]} : vector<8x128xf32> to vector<8x16xf32>
    %cst = arith.constant 0.000000e+00 : f32
    %9 = vector.broadcast %cst : f32 to vector<8x96xf32>
    %10 = tpu.concatenate %7, %8, %9 in 1 : vector<8x16xf32>, vector<8x16xf32>, vector<8x96xf32> -> vector<8x128xf32>
    %c0_3 = arith.constant 0 : index
    %c0_4 = arith.constant 0 : index
    %11 = vector.load %arg3[%c0_3, %c0_4] : memref<8x128xf32, #tpu.memory_space<vmem>>, vector<8x128xf32>
    tpu.vector_store %arg3[%c0_3, %c0_4], %10 {strides = array<i32>} : memref<8x128xf32, #tpu.memory_space<vmem>>, vector<8x128xf32>,
    return
  }
  func.func @transform_0(%arg0: i32) -> (i32, i32) {
    %c0_i32 = arith.constant 0 : i32
    %c0_i32_0 = arith.constant 0 : i32
    %c0_i32_1 = arith.constant 0 : i32
    return %c0_i32, %c0_i32_0 : i32, i32
  }
  func.func @transform_1(%arg0: i32) -> (i32, i32) {
    %c0_i32 = arith.constant 0 : i32
    %c0_i32_0 = arith.constant 0 : i32
    return %arg0, %c0_i32 : i32, i32
  }
  func.func @transform_2(%arg0: i32) -> (i32, i32) {
    %c0_i32 = arith.constant 0 : i32
    %c0_i32_0 = arith.constant 0 : i32
    return %arg0, %c0_i32 : i32, i32
  }
}

</mosaic_0001>

<llo_original>
// kernel: tpu_custom_call.1
$region0: #{tpu_custom_call.1}
  #allocation0 [shape = 'u32[]', space=smem, size = 0x4, offset = 0x4, fixed_abs, tag = 'smem constant byte address 0x4 - core index']
  #allocation1 [shape = 'u32[72,128]{1,0:T(1,128)}', space=vmem, size = 0x9000, scoped, tag = 'internal scratch']
  %s0 = inlined_call_operand.vmem [shape: f32[1,128], index: 0, kind: input, shape index: {}]
  %s1 = inlined_call_operand.vmem [shape: f32[8,1], index: 1, kind: input, shape index: {}]
  %s2 = inlined_call_operand.hbm [shape: f32[8,128], index: 2, kind: output, shape index: {}]
  %s3 = sld [smem:[#allocation0]]
  $region18: #{tpu_custom_call.1} parent=0
    _
  %s5 = ssub.s32 1, %s3
  %s6 = scalar_select 0, %s5, %s3
  $region1: #{tpu_custom_call.1} parent=0
    #allocation2 [shape = 'u8[4096]{0}', space=vmem, size = 0x1000, scoped, tag = 'output window, operand 0, single buffered']
    #allocation3 [shape = 's32[1]{0}', space=sflag, size = 0x4, scoped, tag = 'scoped memory for tpu_custom_call.1']
    %7 = vsyncpa [#allocation3], 0
    // Predicated region
    $region2: #{tpu_custom_call.1} parent=1 // pred_check
      _
    $region3: #{tpu_custom_call.1} parent=1 // pred_check_branch
      %9 = sbr.rel (0) target = $region5
    $region4: #{tpu_custom_call.1} parent=1 // pred_region
      _
    $region5: #{tpu_custom_call.1} parent=1 // pred_fallthru
      _
    // Predicated region
    $region6: #{tpu_custom_call.1} parent=1 // pred_check
      _
    $region7: #{tpu_custom_call.1} parent=1 // pred_check_branch
      %11 = sbr.rel (0) target = $region9
    $region8: #{tpu_custom_call.1} parent=1 // pred_region
      _
    $region9: #{tpu_custom_call.1} parent=1 // pred_fallthru
      _
    %v12 = vld [vmem:[%s1] sm:$0xff]
    %v13 = vld [vmem:[%s0] sm:$0x1]
    %15 = vset.pattern.permute.xlu0 0
    %16 = vperm.xlu0 %15, %v12
    %v17 = vpop.permute.xlu0 %16
    %v20 = vperm.slane %v13, 0
    %v22 = vmul.f32 %v17, %v20
    %v23 = vand.u32 2147483647, %v22
    %vm24 = vcmp.le.f32.partialorder %v23, 0.7853982
    %vm25 = vcmp.lt.s32.totalorder %v22, 0
    %v26 = vand.u32 %v22, 2139095040
    %v27 = vshrl.u32 %v26, 23
    %v28 = vsub.s32 %v27, 127
    %v29 = vand.u32 2147483647, %v22
    %v30 = vand.u32 %v29, 8388607
    %v31 = vor.u32 %v30, 8388608
    %v32 = vsub.s32 0, %v31
    %v33 = vadd.s32 %v28, 1
    %vm34 = vcmp.gt.s32.totalorder %v33, 0
    %v35 = vsel %vm34, %v33, 0
    %v36 = vshrl.u32 %v35, 5
    %v37 = vand.u32 %v35, 31
    %v38 = vsub.s32 32, %v37
    %v39 = vshrl.u32 683565275, %v38
    %v40 = vshll.u32 683565275, %v37
    %v41 = vshrl.u32 2475754826, %v38
    %v42 = vor.u32 %v40, %v41
    %v43 = vshll.u32 2475754826, %v37
    %v44 = vshrl.u32 2131351028, %v38
    %v45 = vor.u32 %v43, %v44
    %v46 = vshll.u32 2131351028, %v37
    %v47 = vshrl.u32 2102212464, %v38
    %v48 = vor.u32 %v46, %v47
    %v49 = vshll.u32 2102212464, %v37
    %v50 = vshrl.u32 920167782, %v38
    %v51 = vor.u32 %v49, %v50
    %v52 = vshll.u32 920167782, %v37
    %v53 = vshrl.u32 1326507024, %v38
    %v54 = vor.u32 %v52, %v53
    %vm55 = vcmp.lt.s32.totalorder %v36, 1
    %vm56 = vcmp.lt.s32.totalorder %v36, 2
    %vm57 = vcmp.lt.s32.totalorder %v36, 3
    %vm58 = vcmp.lt.s32.totalorder %v36, 4
    %v59 = vsel %vm55, %v39, %v42
    %v60 = vsel %vm58, %v48, 2102212464
    %v61 = vsel %vm57, %v45, %v60
    %v62 = vsel %vm56, %v59, %v61
    %v63 = vsel %vm55, %v42, %v45
    %v64 = vsel %vm58, %v51, 920167782
    %v65 = vsel %vm57, %v48, %v64
    %v66 = vsel %vm56, %v63, %v65
    %v67 = vsel %vm55, %v45, %v48
    %v68 = vsel %vm58, %v54, 1326507024
    %v69 = vsel %vm57, %v51, %v68
    %v70 = vsel %vm56, %v67, %v69
    %v71 = vshll.u32 %v31, 8
    %v72 = vand.u32 %v71, 65535
    %v73 = vshrl.u32 %v71, 16
    %v74 = vand.u32 %v70, 65535
    %v75 = vshrl.u32 %v70, 16
    %v76 = vmul.u32 %v72, %v74
    %v77 = vmul.u32 %v72, %v75
    %v78 = vmul.u32 %v73, %v74
    %v79 = vmul.u32 %v73, %v75
    %v80 = vshll.u32 %v77, 16
    %v81 = vshrl.u32 %v77, 16
    %v82 = vshll.u32 %v78, 16
    %v83 = vshrl.u32 %v78, 16
    %vm84 = vc.u32 %v76, %v80
    %v85 = vsel %vm84, 1, 0
    %v86 = vadd.s32 %v76, %v80
    %v87 = vadd.s32 %v79, %v85
    %vm88 = vc.u32 %v86, %v82
    %v89 = vsel %vm88, 1, 0
    %v90 = vadd.s32 %v86, %v82
    %v91 = vadd.s32 %v87, %v89
    %v92 = vadd.s32 %v91, %v81
    %v93 = vadd.s32 %v92, %v83
    %v94 = vand.u32 %v71, 65535
    %v95 = vshrl.u32 %v71, 16
    %v96 = vand.u32 %v66, 65535
    %v97 = vshrl.u32 %v66, 16
    %v98 = vmul.u32 %v94, %v96
    %v99 = vmul.u32 %v94, %v97
    %v100 = vmul.u32 %v95, %v96
    %v101 = vmul.u32 %v95, %v97
    %v102 = vshll.u32 %v99, 16
    %v103 = vshrl.u32 %v99, 16
    %v104 = vshll.u32 %v100, 16
    %v105 = vshrl.u32 %v100, 16
    %vm106 = vc.u32 %v98, %v102
    %v107 = vsel %vm106, 1, 0
    %v108 = vadd.s32 %v98, %v102
    %v109 = vadd.s32 %v101, %v107
    %vm110 = vc.u32 %v108, %v104
    %v111 = vsel %vm110, 1, 0
    %v112 = vadd.s32 %v108, %v104
    %v113 = vadd.s32 %v109, %v111
    %v114 = vadd.s32 %v113, %v103
    %v115 = vadd.s32 %v114, %v105
    %v116 = vmul.u32 %v71, %v62
    %v117 = vadd.s32 %v93, %v112
    %vm118 = vc.u32 %v93, %v112
    %v119 = vadd.s32 %v115, 1
    %v120 = vsel %vm118, %v119, %v115
    %v121 = vadd.s32 %v116, %v120
    %v122 = vadd.s32 %v121, 536870912
    %v123 = vshrl.u32 %v122, 30
    %v124 = vshll.u32 %v123, 30
    %v125 = vsub.s32 %v121, %v124
    %vm126 = vcmp.lt.s32.totalorder %v125, 0
    %v127 = vsub.s32 0, %v125
    %v128 = vsel %vm126, %v127, %v125
    %v129 = vclz %v128
    %v130 = vsub.s32 %v129, 2
    %vm131 = vcmp.gt.s32.totalorder 0, %v130
    %v132 = vsel %vm131, 0, %v130
    %v133 = vsub.s32 32, %v132
    %v134 = vshll.u32 %v125, %v132
    %v135 = vshrl.u32 %v117, %v133
    %v136 = vor.u32 %v134, %v135
    %v137 = vsub.s32 4294967266, %v132
    %v138 = vadd.s32 %v137, 127
    %v139 = vshll.u32 %v138, 23
    %v140 = vor.u32 4788187, %v139
    %v141 = vand.u32 2147483647, %v140
    %v143 = vcvt.s32.f32 %v136
    %v144 = vmul.f32 %v143, %v141
    %v145 = vxor.u32 %v144, 2147483648
    %v146 = vsel %vm25, %v145, %v144
    %v147 = vsub.s32 4, %v123
    %v148 = vsel %vm25, %v147, %v123
    %v149 = vsel %vm24, %v22, %v146
    %v150 = vsel %vm24, 0, %v148
    %v151 = vmul.f32 %v149, %v149
    %v152 = vmul.f32 %v151, -0.001358992
    %v153 = vadd.f32 %v152, 0.041655596
    %v154 = vmul.f32 %v151, %v153
    %v155 = vadd.f32 %v154, -0.4999988
    %v156 = vmul.f32 %v151, %v155
    %v157 = vadd.f32 1.0, %v156
    %v158 = vmul.f32 %v149, %v149
    %v159 = vmul.f32 %v158, -0.00019511016
    %v160 = vadd.f32 %v159, 0.008332121
    %v161 = vmul.f32 %v158, %v160
    %v162 = vadd.f32 %v161, -0.16666654
    %v163 = vmul.f32 %v158, %v162
    %v164 = vadd.f32 %v163, 1.0
    %v165 = vmul.f32 %v164, %v149
    %vm166 = vweird.f32 %v22
    %v167 = vand.u32 %v150, 3
    %vm168 = vcmp.lt.s32.totalorder %v167, 2
    %vm169 = vcmp.eq.s32.totalorder %v167, 0
    %v170 = vxor.u32 %v165, 2147483648
    %v171 = vsel %vm169, %v157, %v170
    %vm172 = vcmp.eq.s32.totalorder %v167, 2
    %v173 = vxor.u32 %v157, 2147483648
    %v174 = vsel %vm172, %v173, %v165
    %v175 = vsel %vm168, %v171, %v174
    %v176 = vsel %vm166, nan, %v175
    %v177 = vand.u32 2147483647, %v22
    %vm178 = vcmp.le.f32.partialorder %v177, 0.7853982
    %vm179 = vcmp.lt.s32.totalorder %v22, 0
    %v180 = vand.u32 %v22, 2139095040
    %v181 = vshrl.u32 %v180, 23
    %v182 = vsub.s32 %v181, 127
    %v183 = vand.u32 2147483647, %v22
    %v184 = vand.u32 %v183, 8388607
    %v185 = vor.u32 %v184, 8388608
    %v186 = vsub.s32 0, %v185
    %v187 = vadd.s32 %v182, 1
    %vm188 = vcmp.gt.s32.totalorder %v187, 0
    %v189 = vsel %vm188, %v187, 0
    %v190 = vshrl.u32 %v189, 5
    %v191 = vand.u32 %v189, 31
    %v192 = vsub.s32 32, %v191
    %v193 = vshrl.u32 683565275, %v192
    %v194 = vshll.u32 683565275, %v191
    %v195 = vshrl.u32 2475754826, %v192
    %v196 = vor.u32 %v194, %v195
    %v197 = vshll.u32 2475754826, %v191
    %v198 = vshrl.u32 2131351028, %v192
    %v199 = vor.u32 %v197, %v198
    %v200 = vshll.u32 2131351028, %v191
    %v201 = vshrl.u32 2102212464, %v192
    %v202 = vor.u32 %v200, %v201
    %v203 = vshll.u32 2102212464, %v191
    %v204 = vshrl.u32 920167782, %v192
    %v205 = vor.u32 %v203, %v204
    %v206 = vshll.u32 920167782, %v191
    %v207 = vshrl.u32 1326507024, %v192
    %v208 = vor.u32 %v206, %v207
    %vm209 = vcmp.lt.s32.totalorder %v190, 1
    %vm210 = vcmp.lt.s32.totalorder %v190, 2
    %vm211 = vcmp.lt.s32.totalorder %v190, 3
    %vm212 = vcmp.lt.s32.totalorder %v190, 4
    %v213 = vsel %vm209, %v193, %v196
    %v214 = vsel %vm212, %v202, 2102212464
    %v215 = vsel %vm211, %v199, %v214
    %v216 = vsel %vm210, %v213, %v215
    %v217 = vsel %vm209, %v196, %v199
    %v218 = vsel %vm212, %v205, 920167782
    %v219 = vsel %vm211, %v202, %v218
    %v220 = vsel %vm210, %v217, %v219
    %v221 = vsel %vm209, %v199, %v202
    %v222 = vsel %vm212, %v208, 1326507024
    %v223 = vsel %vm211, %v205, %v222
    %v224 = vsel %vm210, %v221, %v223
    %v225 = vshll.u32 %v185, 8
    %v226 = vand.u32 %v225, 65535
    %v227 = vshrl.u32 %v225, 16
    %v228 = vand.u32 %v224, 65535
    %v229 = vshrl.u32 %v224, 16
    %v230 = vmul.u32 %v226, %v228
    %v231 = vmul.u32 %v226, %v229
    %v232 = vmul.u32 %v227, %v228
    %v233 = vmul.u32 %v227, %v229
    %v234 = vshll.u32 %v231, 16
    %v235 = vshrl.u32 %v231, 16
    %v236 = vshll.u32 %v232, 16
    %v237 = vshrl.u32 %v232, 16
    %vm238 = vc.u32 %v230, %v234
    %v239 = vsel %vm238, 1, 0
    %v240 = vadd.s32 %v230, %v234
    %v241 = vadd.s32 %v233, %v239
    %vm242 = vc.u32 %v240, %v236
    %v243 = vsel %vm242, 1, 0
    %v244 = vadd.s32 %v240, %v236
    %v245 = vadd.s32 %v241, %v243
    %v246 = vadd.s32 %v245, %v235
    %v247 = vadd.s32 %v246, %v237
    %v248 = vand.u32 %v225, 65535
    %v249 = vshrl.u32 %v225, 16
    %v250 = vand.u32 %v220, 65535
    %v251 = vshrl.u32 %v220, 16
    %v252 = vmul.u32 %v248, %v250
    %v253 = vmul.u32 %v248, %v251
    %v254 = vmul.u32 %v249, %v250
    %v255 = vmul.u32 %v249, %v251
    %v256 = vshll.u32 %v253, 16
    %v257 = vshrl.u32 %v253, 16
    %v258 = vshll.u32 %v254, 16
    %v259 = vshrl.u32 %v254, 16
    %vm260 = vc.u32 %v252, %v256
    %v261 = vsel %vm260, 1, 0
    %v262 = vadd.s32 %v252, %v256
    %v263 = vadd.s32 %v255, %v261
    %vm264 = vc.u32 %v262, %v258
    %v265 = vsel %vm264, 1, 0
    %v266 = vadd.s32 %v262, %v258
    %v267 = vadd.s32 %v263, %v265
    %v268 = vadd.s32 %v267, %v257
    %v269 = vadd.s32 %v268, %v259
    %v270 = vmul.u32 %v225, %v216
    %v271 = vadd.s32 %v247, %v266
    %vm272 = vc.u32 %v247, %v266
    %v273 = vadd.s32 %v269, 1
    %v274 = vsel %vm272, %v273, %v269
    %v275 = vadd.s32 %v270, %v274
    %v276 = vadd.s32 %v275, 536870912
    %v277 = vshrl.u32 %v276, 30
    %v278 = vshll.u32 %v277, 30
    %v279 = vsub.s32 %v275, %v278
    %vm280 = vcmp.lt.s32.totalorder %v279, 0
    %v281 = vsub.s32 0, %v279
    %v282 = vsel %vm280, %v281, %v279
    %v283 = vclz %v282
    %v284 = vsub.s32 %v283, 2
    %vm285 = vcmp.gt.s32.totalorder 0, %v284
    %v286 = vsel %vm285, 0, %v284
    %v287 = vsub.s32 32, %v286
    %v288 = vshll.u32 %v279, %v286
    %v289 = vshrl.u32 %v271, %v287
    %v290 = vor.u32 %v288, %v289
    %v291 = vsub.s32 4294967266, %v286
    %v292 = vadd.s32 %v291, 127
    %v293 = vshll.u32 %v292, 23
    %v294 = vor.u32 4788187, %v293
    %v295 = vand.u32 2147483647, %v294
    %v297 = vcvt.s32.f32 %v290
    %v298 = vmul.f32 %v297, %v295
    %v299 = vxor.u32 %v298, 2147483648
    %v300 = vsel %vm179, %v299, %v298
    %v301 = vsub.s32 4, %v277
    %v302 = vsel %vm179, %v301, %v277
    %v303 = vsel %vm178, %v22, %v300
    %v304 = vsel %vm178, 0, %v302
    %v305 = vmul.f32 %v303, %v303
    %v306 = vmul.f32 %v305, -0.001358992
    %v307 = vadd.f32 %v306, 0.041655596
    %v308 = vmul.f32 %v305, %v307
    %v309 = vadd.f32 %v308, -0.4999988
    %v310 = vmul.f32 %v305, %v309
    %v311 = vadd.f32 1.0, %v310
    %v312 = vmul.f32 %v303, %v303
    %v313 = vmul.f32 %v312, -0.00019511016
    %v314 = vadd.f32 %v313, 0.008332121
    %v315 = vmul.f32 %v312, %v314
    %v316 = vadd.f32 %v315, -0.16666654
    %v317 = vmul.f32 %v312, %v316
    %v318 = vadd.f32 %v317, 1.0
    %v319 = vmul.f32 %v318, %v303
    %vm320 = vweird.f32 %v22
    %v321 = vadd.s32 %v304, 3
    %v322 = vand.u32 %v321, 3
    %vm323 = vcmp.lt.s32.totalorder %v322, 2
    %vm324 = vcmp.eq.s32.totalorder %v322, 0
    %v325 = vxor.u32 %v319, 2147483648
    %v326 = vsel %vm324, %v311, %v325
    %vm327 = vcmp.eq.s32.totalorder %v322, 2
    %v328 = vxor.u32 %v311, 2147483648
    %v329 = vsel %vm327, %v328, %v319
    %v330 = vsel %vm323, %v326, %v329
    %v331 = vsel %vm320, nan, %v330
    %333 = vrot.lane.b32.xlu0 %v331, 16
    %v334 = vpop.permute.xlu0 %333
    %vm336 = vcmask 130048
    %v337 = vsel %vm336, %v176, %v334
    %vm338 = vcmask 261120
    %v339 = vsel %vm338, %v337, 0.0
    %340 = vst [vmem:[#allocation2] sm:$0xff] %v339
    // Predicated region
    $region10: #{tpu_custom_call.1} parent=1 // pred_check
      _
    $region11: #{tpu_custom_call.1} parent=1 // pred_check_branch
      %342 = sbr.rel (0) target = $region13
    $region12: #{tpu_custom_call.1} parent=1 // pred_region
      %344 = vsyncadd [#allocation3], 0
      %s346 = sshll.u32 [#allocation2], 4
      %s347 = int_to_ptr.vmem [resolvable:$true] %s346
      %s348 = sshll.u32 %s2, 4
      %s349 = int_to_ptr.hbm [resolvable:$true] %s348
      %351 = dma.vmem_to_hbm [thread:$0]  %s347, 128, %s349, [#allocation3]
    $region13: #{tpu_custom_call.1} parent=1 // pred_fallthru
      _
    // Predicated region
    $region14: #{tpu_custom_call.1} parent=1 // pred_check
      _
    $region15: #{tpu_custom_call.1} parent=1 // pred_check_branch
      %353 = sbr.rel (0) target = $region17
    $region16: #{tpu_custom_call.1} parent=1 // pred_region
      %355 = dma.done [#allocation3], 128
    $region17: #{tpu_custom_call.1} parent=1 // pred_fallthru
      _
    %356 = vsyncpa [#allocation3], 1

</llo_original>
